<compile_context>
chip_gen: v7x
topology: tpu7x:2x2x1
jax: 0.10.0
libtpu: 0.0.40
codegen_flags: <defaults>
</compile_context>

<pallas_src>
import numpy as np
import jax
import jax.numpy as jnp
from jax import lax
from jax.experimental import pallas as pl
from jax.experimental.pallas import tpu as pltpu


def _backproject_kernel(invk_ref, depth_ref, out_ref):
    """One (batch-tile, row-tile) grid step.

    invk_ref : SMEM (N*9,) f32   row-major 3x3 inverse intrinsics per image
    depth_ref: VMEM (BT, 1, TH, W)
    out_ref  : VMEM (BT, 4, TH, W)
    """
    bi = pl.program_id(0)
    hi = pl.program_id(1)
    b_tile, _, th, w = depth_ref.shape
    shape = (1, 1, th, w)

    # Pixel coordinates generated in-kernel (no HBM xy stream).  Hoisted out of
    # the unrolled batch loop so they are computed once per grid step.
    row0 = (hi * th).astype(jnp.float32)
    y = lax.broadcasted_iota(jnp.int32, shape, 2).astype(jnp.float32) + row0
    x = lax.broadcasted_iota(jnp.int32, shape, 3).astype(jnp.float32)
    ones = jnp.ones(shape, out_ref.dtype)

    for b in range(b_tile):                    # static unroll over the batch tile
        base = (bi * b_tile + b) * 9
        k00 = invk_ref[base + 0]
        k01 = invk_ref[base + 1]
        k02 = invk_ref[base + 2]
        k10 = invk_ref[base + 3]
        k11 = invk_ref[base + 4]
        k12 = invk_ref[base + 5]
        k20 = invk_ref[base + 6]
        k21 = invk_ref[base + 7]
        k22 = invk_ref[base + 8]

        d = depth_ref[b:b + 1, :, :, :].astype(jnp.float32)

        # 3x3 matmul against [x, y, 1] done as VPU FMAs.
        out_ref[b:b + 1, 0:1, :, :] = (d * (k00 * x + k01 * y + k02)).astype(out_ref.dtype)
        out_ref[b:b + 1, 1:2, :, :] = (d * (k10 * x + k11 * y + k12)).astype(out_ref.dtype)
        out_ref[b:b + 1, 2:3, :, :] = (d * (k20 * x + k21 * y + k22)).astype(out_ref.dtype)
        out_ref[b:b + 1, 3:4, :, :] = ones
        # TODO(synk): if the consumer could take 3-channel points, dropping the
        # constant ones plane would save ~20% of HBM traffic; kept for API parity.


def _plan_tiling(n, height, width, target_pixels=256 * 1024, max_pixels=320 * 1024):
    """Pick (batch_tile, rows_per_tile).

    The kernel is HBM-bound (~20 B/pixel f32), so each grid step must move
    several MB to hide the ~0.35 us fixed per-step overhead.  Target ~256K
    pixels (~5 MB) per step; cap so double-buffered blocks + elementwise
    temporaries stay comfortably inside scoped VMEM on all generations
    (including v7x's 64 MiB physical VMEM).
    """
    divs = [d for d in range(1, height + 1) if height % d == 0]
    cands = [d for d in divs if d % 8 == 0 or d == height] or divs

    rows = cands[0]
    for d in cands:
        if d * width > max_pixels:
            break
        rows = d
        if d * width >= target_pixels:
            break

    # If a whole image is still far below the target, also tile over batch.
    b_tile = 1
    if rows == height and height * width < target_pixels:
        for d in [d for d in range(1, n + 1) if n % d == 0]:
            if d * height * width > max_pixels:
                break
            b_tile = d
            if d * height * width >= target_pixels:
                break

    # Keep at least two grid steps (pipelining / megacore) whenever possible.
    def total(bt, r):
        return (n // bt) * (height // r)

    if total(b_tile, rows) < 2:
        bt_opts = [d for d in range(1, n + 1) if n % d == 0 and total(d, rows) >= 2]
        if bt_opts:
            b_tile = bt_opts[-1]
        else:
            b_tile = 1
            row_opts = [d for d in cands if total(1, d) >= 2]
            if row_opts:
                rows = row_opts[-1]
    return b_tile, rows


def make_backprojection(height, width, target_pixels=256 * 1024, max_pixels=320 * 1024):
    """Returns (xy_buffer, forward_fn) replicating Backprojection.__init__/forward."""
    hw = height * width

    # Buffer `xy` (3, H*W): homogeneous pixel coordinates (API parity with the
    # PyTorch registered buffer).  The kernel regenerates these in-kernel
    # instead of streaming this buffer from HBM.
    mesh_x, mesh_y = np.meshgrid(range(width), range(height), indexing='xy')
    xy = jnp.asarray(
        np.stack([mesh_x.reshape(-1), mesh_y.reshape(-1), np.ones(hw)], axis=0)
        .astype(np.float32))                  # (3, H*W)

    # NOTE: dir_in_virt_cam / angle-range buffers from __init__ are unused in
    # forward(), so they are not materialized here.

    def forward(depth, inv_K, img_like_out=False):
        """depth: (N, 1, H, W), inv_K: (N, 4, 4) -> (N, 4, H*W)
        (or (N, 4, H, W) if img_like_out)."""
        n = depth.shape[0]
        assert depth.shape == (n, 1, height, width)
        b_tile, rows = _plan_tiling(n, height, width, target_pixels, max_pixels)
        grid = (n // b_tile, height // rows)

        inv_k9 = inv_K[:, :3, :3].reshape(-1).astype(jnp.float32)   # (N*9,) -> SMEM

        out = pl.pallas_call(
            _backproject_kernel,
            out_shape=jax.ShapeDtypeStruct((n, 4, height, width), depth.dtype),
            grid_spec=pltpu.PrefetchScalarGridSpec(
                num_scalar_prefetch=1,
                grid=grid,
                in_specs=[
                    pl.BlockSpec((b_tile, 1, rows, width),
                                 lambda bi, hi, invk: (bi, 0, hi, 0)),   # depth tile
                ],
                out_specs=pl.BlockSpec((b_tile, 4, rows, width),
                                       lambda bi, hi, invk: (bi, 0, hi, 0)),
            ),
            compiler_params=pltpu.CompilerParams(
                dimension_semantics=("parallel", "parallel"),
                vmem_limit_bytes=48 * 1024 * 1024),
        )(inv_k9, depth)

        if img_like_out:
            return out
        return out.reshape(n, 4, hw)

    return xy, forward


if __name__ == "__main__":
    # Small, deterministic example consistent with the module: N=2, H=W=16.
    N, H, W = 2, 16, 16
    key = jax.random.PRNGKey(0)
    kd, kk = jax.random.split(key)

    depth = jax.random.uniform(kd, (N, 1, H, W), jnp.float32, 0.5, 5.0)

    # Deterministic synthetic inverse intrinsics (Nx4x4).
    fx, fy, cx, cy = 20.0, 22.0, (W - 1) / 2.0, (H - 1) / 2.0
    K = jnp.array(
        [[fx, 0.0, cx, 0.0],
         [0.0, fy, cy, 0.0],
         [0.0, 0.0, 1.0, 0.0],
         [0.0, 0.0, 0.0, 1.0]], jnp.float32)
    jitter = 1.0 + 0.01 * jax.random.normal(kk, (N, 1, 1), jnp.float32)
    inv_K = jnp.linalg.inv(K)[None] * jitter   # (N, 4, 4), slightly different per batch

    xy_buf, forward = make_backprojection(H, W)

    points = forward(depth, inv_K, img_like_out=False)
    jax.block_until_ready(points)

    # Pure-JAX reference (mirrors the PyTorch forward exactly).
    depth_flat = depth.reshape(N, 1, H * W)
    ref_top = depth_flat * jnp.einsum('nij,jk->nik', inv_K[:, :3, :3], xy_buf)
    ref = jnp.concatenate([ref_top, jnp.ones((N, 1, H * W), jnp.float32)], axis=1)

    assert points.shape == (N, 4, H * W)
    np.testing.assert_allclose(np.asarray(points), np.asarray(ref), rtol=1e-5, atol=1e-5)

    # Also exercise the img_like_out=True path (kernel-native layout).
    points_img = forward(depth, inv_K, img_like_out=True)
    jax.block_until_ready(points_img)
    assert points_img.shape == (N, 4, H, W)
    np.testing.assert_allclose(np.asarray(points_img.reshape(N, 4, H * W)),
                               np.asarray(ref), rtol=1e-5, atol=1e-5)

    print("KERNEL_OK")
</pallas_src>

<mosaic_0001>
module attributes {stable_mosaic.version = 11 : i64} {
  func.func @_backproject_kernel(%arg0: i32, %arg1: i32, %arg2: memref<18xf32, #tpu.memory_space<smem>>, %arg3: memref<1x1x16x16xf32, #tpu.memory_space<vmem>>, %arg4: memref<1x4x16x16xf32, #tpu.memory_space<vmem>>) attributes {dimension_semantics = [#tpu.dimension_semantics<parallel>, #tpu.dimension_semantics<parallel>], iteration_bounds = array<i64: 2, 1>, scalar_prefetch = 1 : i64, scratch_operands = 0 : i64, tpu.core_type = #tpu.core_type<tc>, window_params = [{transform_indices = @transform_0, window_bounds = array<i64: 1, 1, 16, 16>}, {transform_indices = @transform_1, window_bounds = array<i64: 1, 4, 16, 16>}]} {
    %c16_i32 = arith.constant 16 : i32
    %0 = arith.muli %arg1, %c16_i32 : i32
    %1 = arith.sitofp %0 : i32 to f32
    %2 = tpu.iota {dimensions = array<i32: 2>} : vector<1x1x16x16xi32>
    %3 = arith.sitofp %2 : vector<1x1x16x16xi32> to vector<1x1x16x16xf32>
    %4 = vector.broadcast %1 : f32 to vector<1x1x16x16xf32>
    %5 = arith.addf %3, %4 : vector<1x1x16x16xf32>
    %6 = tpu.iota {dimensions = array<i32: 3>} : vector<1x1x16x16xi32>
    %7 = arith.sitofp %6 : vector<1x1x16x16xi32> to vector<1x1x16x16xf32>
    %cst = arith.constant 1.000000e+00 : f32
    %8 = vector.broadcast %cst : f32 to vector<1x1x16x16xf32>
    %c1_i32 = arith.constant 1 : i32
    %9 = arith.muli %arg0, %c1_i32 : i32
    %c0_i32 = arith.constant 0 : i32
    %10 = arith.addi %9, %c0_i32 : i32
    %c9_i32 = arith.constant 9 : i32
    %11 = arith.muli %10, %c9_i32 : i32
    %c0_i32_0 = arith.constant 0 : i32
    %12 = arith.addi %11, %c0_i32_0 : i32
    %13 = arith.index_cast %12 : i32 to index
    %14 = memref.load %arg2[%13] : memref<18xf32, #tpu.memory_space<smem>>
    %c1_i32_1 = arith.constant 1 : i32
    %15 = arith.addi %11, %c1_i32_1 : i32
    %16 = arith.index_cast %15 : i32 to index
    %17 = memref.load %arg2[%16] : memref<18xf32, #tpu.memory_space<smem>>
    %c2_i32 = arith.constant 2 : i32
    %18 = arith.addi %11, %c2_i32 : i32
    %19 = arith.index_cast %18 : i32 to index
    %20 = memref.load %arg2[%19] : memref<18xf32, #tpu.memory_space<smem>>
    %c3_i32 = arith.constant 3 : i32
    %21 = arith.addi %11, %c3_i32 : i32
    %22 = arith.index_cast %21 : i32 to index
    %23 = memref.load %arg2[%22] : memref<18xf32, #tpu.memory_space<smem>>
    %c4_i32 = arith.constant 4 : i32
    %24 = arith.addi %11, %c4_i32 : i32
    %25 = arith.index_cast %24 : i32 to index
    %26 = memref.load %arg2[%25] : memref<18xf32, #tpu.memory_space<smem>>
    %c5_i32 = arith.constant 5 : i32
    %27 = arith.addi %11, %c5_i32 : i32
    %28 = arith.index_cast %27 : i32 to index
    %29 = memref.load %arg2[%28] : memref<18xf32, #tpu.memory_space<smem>>
    %c6_i32 = arith.constant 6 : i32
    %30 = arith.addi %11, %c6_i32 : i32
    %31 = arith.index_cast %30 : i32 to index
    %32 = memref.load %arg2[%31] : memref<18xf32, #tpu.memory_space<smem>>
    %c7_i32 = arith.constant 7 : i32
    %33 = arith.addi %11, %c7_i32 : i32
    %34 = arith.index_cast %33 : i32 to index
    %35 = memref.load %arg2[%34] : memref<18xf32, #tpu.memory_space<smem>>
    %c8_i32 = arith.constant 8 : i32
    %36 = arith.addi %11, %c8_i32 : i32
    %37 = arith.index_cast %36 : i32 to index
    %38 = memref.load %arg2[%37] : memref<18xf32, #tpu.memory_space<smem>>
    %c0 = arith.constant 0 : index
    %c0_2 = arith.constant 0 : index
    %c0_3 = arith.constant 0 : index
    %c0_4 = arith.constant 0 : index
    %39 = vector.load %arg3[%c0, %c0_2, %c0_3, %c0_4] : memref<1x1x16x16xf32, #tpu.memory_space<vmem>>, vector<1x1x16x16xf32>
    %40 = vector.broadcast %14 : f32 to vector<1x1x16x16xf32>
    %41 = arith.mulf %40, %7 : vector<1x1x16x16xf32>
    %42 = vector.broadcast %17 : f32 to vector<1x1x16x16xf32>
    %43 = arith.mulf %42, %5 : vector<1x1x16x16xf32>
    %44 = arith.addf %41, %43 : vector<1x1x16x16xf32>
    %45 = vector.broadcast %20 : f32 to vector<1x1x16x16xf32>
    %46 = arith.addf %44, %45 : vector<1x1x16x16xf32>
    %47 = arith.mulf %39, %46 : vector<1x1x16x16xf32>
    %c0_5 = arith.constant 0 : index
    %c0_6 = arith.constant 0 : index
    %c0_7 = arith.constant 0 : index
    %c0_8 = arith.constant 0 : index
    %48 = vector.load %arg4[%c0_5, %c0_6, %c0_7, %c0_8] : memref<1x4x16x16xf32, #tpu.memory_space<vmem>>, vector<1x1x16x16xf32>
    tpu.vector_store %arg4[%c0_5, %c0_6, %c0_7, %c0_8], %47 {strides = array<i32>} : memref<1x4x16x16xf32, #tpu.memory_space<vmem>>, vector<1x1x16x16xf32>,
    %49 = vector.broadcast %23 : f32 to vector<1x1x16x16xf32>
    %50 = arith.mulf %49, %7 : vector<1x1x16x16xf32>
    %51 = vector.broadcast %26 : f32 to vector<1x1x16x16xf32>
    %52 = arith.mulf %51, %5 : vector<1x1x16x16xf32>
    %53 = arith.addf %50, %52 : vector<1x1x16x16xf32>
    %54 = vector.broadcast %29 : f32 to vector<1x1x16x16xf32>
    %55 = arith.addf %53, %54 : vector<1x1x16x16xf32>
    %56 = arith.mulf %39, %55 : vector<1x1x16x16xf32>
    %c0_9 = arith.constant 0 : index
    %c1 = arith.constant 1 : index
    %c0_10 = arith.constant 0 : index
    %c0_11 = arith.constant 0 : index
    %57 = vector.load %arg4[%c0_9, %c1, %c0_10, %c0_11] : memref<1x4x16x16xf32, #tpu.memory_space<vmem>>, vector<1x1x16x16xf32>
    tpu.vector_store %arg4[%c0_9, %c1, %c0_10, %c0_11], %56 {strides = array<i32>} : memref<1x4x16x16xf32, #tpu.memory_space<vmem>>, vector<1x1x16x16xf32>,
    %58 = vector.broadcast %32 : f32 to vector<1x1x16x16xf32>
    %59 = arith.mulf %58, %7 : vector<1x1x16x16xf32>
    %60 = vector.broadcast %35 : f32 to vector<1x1x16x16xf32>
    %61 = arith.mulf %60, %5 : vector<1x1x16x16xf32>
    %62 = arith.addf %59, %61 : vector<1x1x16x16xf32>
    %63 = vector.broadcast %38 : f32 to vector<1x1x16x16xf32>
    %64 = arith.addf %62, %63 : vector<1x1x16x16xf32>
    %65 = arith.mulf %39, %64 : vector<1x1x16x16xf32>
    %c0_12 = arith.constant 0 : index
    %c2 = arith.constant 2 : index
    %c0_13 = arith.constant 0 : index
    %c0_14 = arith.constant 0 : index
    %66 = vector.load %arg4[%c0_12, %c2, %c0_13, %c0_14] : memref<1x4x16x16xf32, #tpu.memory_space<vmem>>, vector<1x1x16x16xf32>
    tpu.vector_store %arg4[%c0_12, %c2, %c0_13, %c0_14], %65 {strides = array<i32>} : memref<1x4x16x16xf32, #tpu.memory_space<vmem>>, vector<1x1x16x16xf32>,
    %c0_15 = arith.constant 0 : index
    %c3 = arith.constant 3 : index
    %c0_16 = arith.constant 0 : index
    %c0_17 = arith.constant 0 : index
    %67 = vector.load %arg4[%c0_15, %c3, %c0_16, %c0_17] : memref<1x4x16x16xf32, #tpu.memory_space<vmem>>, vector<1x1x16x16xf32>
    tpu.vector_store %arg4[%c0_15, %c3, %c0_16, %c0_17], %8 {strides = array<i32>} : memref<1x4x16x16xf32, #tpu.memory_space<vmem>>, vector<1x1x16x16xf32>,
    return
  }
  func.func @transform_0(%arg0: i32, %arg1: i32, %arg2: memref<18xf32, #tpu.memory_space<smem>>) -> (i32, i32, i32, i32) {
    %c0_i32 = arith.constant 0 : i32
    %c0_i32_0 = arith.constant 0 : i32
    %c0_i32_1 = arith.constant 0 : i32
    return %arg0, %c0_i32, %arg1, %c0_i32_0 : i32, i32, i32, i32
  }
  func.func @transform_1(%arg0: i32, %arg1: i32, %arg2: memref<18xf32, #tpu.memory_space<smem>>) -> (i32, i32, i32, i32) {
    %c0_i32 = arith.constant 0 : i32
    %c0_i32_0 = arith.constant 0 : i32
    %c0_i32_1 = arith.constant 0 : i32
    return %arg0, %c0_i32, %arg1, %c0_i32_0 : i32, i32, i32, i32
  }
}

</mosaic_0001>

<llo_original>
// kernel: tpu_custom_call.1
$region0: #{tpu_custom_call.1}
  #allocation0 [shape = 'u32[]', space=smem, size = 0x4, offset = 0x4, fixed_abs, tag = 'smem constant byte address 0x4 - core index']
  #allocation1 [shape = 'u32[144,128]{1,0:T(1,128)}', space=vmem, size = 0x12000, scoped, tag = 'internal scratch']
  #allocation2 [shape = 's32[1]{0}', space=sflag, size = 0x4, scoped, tag = 'scoped memory for tpu_custom_call.1']
  #allocation3 [shape = 'u8[512]{0}', space=smem, size = 0x200, scoped, tag = 'prefetched SMEM operand 0']
  %s0 = inlined_call_operand.hbm [shape: f32[18], index: 0, kind: input, shape index: {}]
  %s1 = inlined_call_operand.hbm [shape: f32[2,1,16,16], index: 1, kind: input, shape index: {}]
  %s2 = inlined_call_operand.hbm [shape: f32[2,4,16,16], index: 2, kind: output, shape index: {}]
  %s3 = sld [smem:[#allocation0]]
  $region41: #{tpu_custom_call.1} parent=0
    _
  %s5 = ssub.s32 1, %s3
  %s6 = scalar_select 0, %s5, %s3
  %8 = dma.hbm_to_smem %s0, 16, [#allocation3], [#allocation2]
  %9 = dma.done [#allocation2], 16
  %10 = sfence
  $region1: #{tpu_custom_call.1} parent=0
    #allocation4 [shape = 'u8[16384]{0}', space=vmem, size = 0x4000, scoped, tag = 'input window, operand 1']
    #allocation5 [shape = 's32[2]{0}', space=sflag, size = 0x8, scoped, tag = 'scoped memory for tpu_custom_call.1']
    #allocation6 [shape = 's32[2]{0}', space=sflag, size = 0x8, scoped, tag = 'scoped memory for tpu_custom_call.1']
    #allocation7 [shape = 'u8[65536]{0}', space=vmem, size = 0x10000, scoped, tag = 'output window, operand 0']
    %11 = vsyncpa [#allocation5], 0
    %s12 = scalar_lea.sflag [#allocation5], 1
    %13 = vsyncpa %s12, 0
    %14 = vsyncpa [#allocation6], 0
    %s15 = scalar_lea.sflag [#allocation6], 1
    %16 = vsyncpa %s15, 0
    loop: start=0, step=1, limit=4
    $region2: #{tpu_custom_call.1} parent=1 // loop_pre_header
      _
    $region3: #{tpu_custom_call.1} parent=1 // loop_header
      %s18 = sphi 0, %s22
      %p19 = scmp.ge.s32.totalorder %s18, 4
      %s25 = sphi 0, %s37
      %s26 = sphi 0, %s33
      %s27 = sphi 0, %s25
      %s28 = sphi 0, %s26
      %s29 = sphi 0, %s27
      %s30 = sphi 0, %s28
      %s42 = sphi 0, %s44
      %s45 = sphi 0, %s42
      %s46 = sphi 0, %s45
      %s62 = sphi 0, %s46
      %s70 = sphi 0, %s72
      %s73 = sphi 0, %s70
      %s74 = sphi 0, %s73
      %s90 = sphi 0, %s74
    $region4: #{tpu_custom_call.1} parent=1 // loop_header_branch
      %21 = sbr.rel (%p19) target = $region8
    $region5: #{tpu_custom_call.1} parent=1 // loop_body
      %s23 = ssub.s32 %s18, 1
      %s24 = ssub.s32 %s18, 2
      %s31 = sadd.s32 1, %s26
      %p32 = scmp.ge.s32.totalorder %s31, 1
      %s33 = scalar_select %p32, 0, %s31
      %s34 = sadd.s32 1, %s25
      %s35 = scalar_select %p32, %s34, %s25
      %p36 = scmp.ge.s32.totalorder %s35, 2
      %s37 = scalar_select %p36, 0, %s35
      %s38 = ssub.s32 %s25, %s37
      %s39 = ssub.s32 %s26, %s33
      %s40 = sor.u32 %s38, %s39
      %p41 = scmp.eq.s32.totalorder %s40, 0
      %s43 = sadd.s32 %s42, 1
      %s44 = scalar_select %p41, %s42, %s43
      %p47 = pneg %p41
      %p48 = scmp.eq.s32.totalorder %s18, 1
      %p49 = por %p47, %p48
      %p50 = scmp.ne.s32.totalorder %s42, %s45
      %p51 = scmp.eq.s32.totalorder %s18, 0
      %p52 = por %p50, %p51
      %p53 = scmp.ne.s32.totalorder %s42, %s45
      %p54 = scmp.eq.s32.totalorder %s23, 1
      %p55 = por %p53, %p54
      %p56 = scmp.ne.s32.totalorder %s45, %s46
      %p57 = scmp.eq.s32.totalorder %s23, 0
      %p58 = por %p56, %p57
      %p59 = scmp.ne.s32.totalorder %s45, %s46
      %p60 = scmp.eq.s32.totalorder %s24, 1
      %p61 = por %p59, %p60
      %p63 = scmp.ne.s32.totalorder %s46, %s62
      %p64 = scmp.eq.s32.totalorder %s24, 0
      %p65 = por %p63, %p64
      %s66 = ssub.s32 %s25, %s37
      %s67 = ssub.s32 %s26, %s33
      %s68 = sor.u32 %s66, %s67
      %p69 = scmp.eq.s32.totalorder %s68, 0
      %s71 = sadd.s32 %s70, 1
      %s72 = scalar_select %p69, %s70, %s71
      %p75 = pneg %p69
      %p76 = scmp.eq.s32.totalorder %s18, 1
      %p77 = por %p75, %p76
      %p78 = scmp.ne.s32.totalorder %s70, %s73
      %p79 = scmp.eq.s32.totalorder %s18, 0
      %p80 = por %p78, %p79
      %p81 = scmp.ne.s32.totalorder %s70, %s73
      %p82 = scmp.eq.s32.totalorder %s23, 1
      %p83 = por %p81, %p82
      %p84 = scmp.ne.s32.totalorder %s73, %s74
      %p85 = scmp.eq.s32.totalorder %s23, 0
      %p86 = por %p84, %p85
      %p87 = scmp.ne.s32.totalorder %s73, %s74
      %p88 = scmp.eq.s32.totalorder %s24, 1
      %p89 = por %p87, %p88
      %p91 = scmp.ne.s32.totalorder %s74, %s90
      %p92 = scmp.eq.s32.totalorder %s24, 0
      %p93 = por %p91, %p92
      %p94 = scmp.le.s32.totalorder 1, %s18
      %p95 = scmp.lt.s32.totalorder %s18, 3
      %p96 = pnand %p94, %p95
      %p97 = pneg %p96
      // Predicated region
      $region9: #{tpu_custom_call.1} parent=5 // pred_check
        _
      $region10: #{tpu_custom_call.1} parent=5 // pred_check_branch
        %99 = sbr.rel (%p96) target = $region12
      $region11: #{tpu_custom_call.1} parent=5 // pred_region
        %s100 = ssub.s32 %s18, 1
      $region12: #{tpu_custom_call.1} parent=5 // pred_fallthru
        _
      %p101 = scmp.lt.s32.totalorder %s18, 2
      // Predicated region
      $region13: #{tpu_custom_call.1} parent=5 // pred_check
        %p102 = pneg %p101
      $region14: #{tpu_custom_call.1} parent=5 // pred_check_branch
        %104 = sbr.rel (%p102) target = $region16
      $region15: #{tpu_custom_call.1} parent=5 // pred_region
        // Predicated region
        $region17: #{tpu_custom_call.1} parent=15 // pred_check
          %p105 = pneg %p52
        $region18: #{tpu_custom_call.1} parent=15 // pred_check_branch
          %107 = sbr.rel (%p105) target = $region20
        $region19: #{tpu_custom_call.1} parent=15 // pred_region
          %s108 = sand.u32 %s42, 1
          %s109 = scalar_lea.sflag [#allocation5], %s108
          %s110 = sand.u32 %s42, 1
          %s111 = smul.addr %s110, 16
          %s112 = scalar_lea.vmem [#allocation4], %s111
          %s113 = smul.u32 2, %s26
          %s115 = ssub.s32 256, 256
          %116 = vsyncadd %s109, %s115
          %s117 = smul.addr %s25, 2
          %s118 = sadd.s32 %s113, %s117
          %s119 = smul.addr %s118, 128
          %s120 = scalar_lea.hbm %s1, %s119
          %s121 = sshll.u32 %s112, 4
          %s122 = int_to_ptr.vmem [resolvable:$true] %s121
          %127 = dma.hbm_to_vmem [thread:$0]  %s120, 256, %s122, %s109, 128, 128, 8
        $region20: #{tpu_custom_call.1} parent=15 // pred_fallthru
          _
      $region16: #{tpu_custom_call.1} parent=5 // pred_fallthru
        _
      %p128 = scmp.le.s32.totalorder 1, %s18
      %p129 = scmp.lt.s32.totalorder %s18, 3
      %p130 = pnand %p128, %p129
      %p131 = pneg %p130
      // Predicated region
      $region21: #{tpu_custom_call.1} parent=5 // pred_check
        _
      $region22: #{tpu_custom_call.1} parent=5 // pred_check_branch
        %133 = sbr.rel (%p130) target = $region24
      $region23: #{tpu_custom_call.1} parent=5 // pred_region
        %s134 = ssub.s32 %s18, 1
        %s135 = sand.u32 %s45, 1
        %s136 = scalar_lea.sflag [#allocation5], %s135
        %s137 = sand.u32 %s45, 1
        %s138 = smul.addr %s137, 16
        %s139 = scalar_lea.vmem [#allocation4], %s138
        // Predicated region
        $region25: #{tpu_custom_call.1} parent=23 // pred_check
          %p140 = pneg %p58
        $region26: #{tpu_custom_call.1} parent=23 // pred_check_branch
          %142 = sbr.rel (%p140) target = $region28
        $region27: #{tpu_custom_call.1} parent=23 // pred_region
          %143 = dma.done %s136, 256
        $region28: #{tpu_custom_call.1} parent=23 // pred_fallthru
          _
        %s144 = sand.u32 %s45, 1
        %s145 = scalar_lea.sflag [#allocation5], %s144
        %s146 = sand.u32 %s45, 1
        %s147 = smul.addr %s146, 16
        %s148 = scalar_lea.vmem [#allocation4], %s147
        %p149 = pneg %p58
        %p150 = pneg %p55
        %p151 = pneg %p86
        %p152 = pneg %p83
        %s153 = sand.u32 %s73, 1
        %s154 = scalar_lea.sflag [#allocation6], %s153
        %s155 = sand.u32 %s73, 1
        %s156 = smul.addr %s155, 64
        %s157 = scalar_lea.vmem [#allocation7], %s156
        %s158 = smul.u32 2, %s28
        %s159 = smul.u32 2, %s28
        %s160 = smul.u32 %s28, 16
        %s161 = scvt.s32.f32 %s160
        %v162 = vlaneseq
        %v163 = vshrl.u32 %v162, 7
        %v164 = vadd.s32 %v163, 8
        %v165 = vcvt.s32.f32 %v163
        %v166 = vcvt.s32.f32 %v164
        %v167 = vstv %s161
        %v168 = vadd.f32 %v165, %v167
        %v169 = vadd.f32 %v166, %v167
        %v170 = vlaneseq
        %v171 = vand.u32 %v170, 127
        %v172 = vcvt.s32.f32 %v171
        %s173 = smul.u32 %s27, 9
        %s174 = sld [smem:[#allocation3 + %s173]]
        %s175 = sadd.s32 %s173, 1
        %s176 = sld [smem:[#allocation3 + %s175]]
        %s177 = sadd.s32 %s173, 2
        %s178 = sld [smem:[#allocation3 + %s177]]
        %s179 = sadd.s32 %s173, 3
        %s180 = sld [smem:[#allocation3 + %s179]]
        %s181 = sadd.s32 %s173, 4
        %s182 = sld [smem:[#allocation3 + %s181]]
        %s183 = sadd.s32 %s173, 5
        %s184 = sld [smem:[#allocation3 + %s183]]
        %s185 = sadd.s32 %s173, 6
        %s186 = sld [smem:[#allocation3 + %s185]]
        %s187 = sadd.s32 %s173, 7
        %s188 = sld [smem:[#allocation3 + %s187]]
        %s189 = sadd.s32 %s173, 8
        %s190 = sld [smem:[#allocation3 + %s189]]
        %v191 = vld [vmem:[%s139] sm:$0xff]
        %v192 = vld [vmem:[%s139 + $0x8] sm:$0xff]
        %v193 = vstv %s174
        %v194 = vmul.f32 %v193, %v172
        %v195 = vstv %s176
        %v196 = vmul.f32 %v195, %v168
        %v197 = vmul.f32 %v195, %v169
        %v198 = vadd.f32 %v194, %v196
        %v199 = vadd.f32 %v194, %v197
        %v200 = vstv %s178
        %v201 = vadd.f32 %v198, %v200
        %v202 = vadd.f32 %v199, %v200
        %v203 = vmul.f32 %v191, %v201
        %v204 = vmul.f32 %v192, %v202
        %vm205 = vcmask 130048
        %206 = vst.msk [vmem:[%s157] sm:$0xff] %vm205, %v203
        %207 = vst.msk [vmem:[%s157 + $0x8] sm:$0xff] %vm205, %v204
        %v208 = vstv %s180
        %v209 = vmul.f32 %v208, %v172
        %v210 = vstv %s182
        %v211 = vmul.f32 %v210, %v168
        %v212 = vmul.f32 %v210, %v169
        %v213 = vadd.f32 %v209, %v211
        %v214 = vadd.f32 %v209, %v212
        %v215 = vstv %s184
        %v216 = vadd.f32 %v213, %v215
        %v217 = vadd.f32 %v214, %v215
        %v218 = vmul.f32 %v191, %v216
        %v219 = vmul.f32 %v192, %v217
        %s220 = scalar_lea.vmem %s157, 16 [#allocation7]
        %221 = vst.msk [vmem:[%s220] sm:$0xff] %vm205, %v218
        %222 = vst.msk [vmem:[%s220 + $0x8] sm:$0xff] %vm205, %v219
        %v223 = vstv %s186
        %v224 = vmul.f32 %v223, %v172
        %v225 = vstv %s188
        %v226 = vmul.f32 %v225, %v168
        %v227 = vmul.f32 %v225, %v169
        %v228 = vadd.f32 %v224, %v226
        %v229 = vadd.f32 %v224, %v227
        %v230 = vstv %s190
        %v231 = vadd.f32 %v228, %v230
        %v232 = vadd.f32 %v229, %v230
        %v233 = vmul.f32 %v191, %v231
        %v234 = vmul.f32 %v192, %v232
        %s235 = scalar_lea.vmem %s157, 32 [#allocation7]
        %236 = vst.msk [vmem:[%s235] sm:$0xff] %vm205, %v233
        %237 = vst.msk [vmem:[%s235 + $0x8] sm:$0xff] %vm205, %v234
        %s238 = scalar_lea.vmem %s157, 48 [#allocation7]
        %239 = vst.msk [vmem:[%s238] sm:$0xff] %vm205, 1.0
        %240 = vst.msk [vmem:[%s238 + $0x8] sm:$0xff] %vm205, 1.0
        %s241 = sand.u32 %s73, 1
        %s242 = scalar_lea.sflag [#allocation6], %s241
        %s243 = sand.u32 %s73, 1
        %s244 = smul.addr %s243, 64
        %s245 = scalar_lea.vmem [#allocation7], %s244
        // Predicated region
        $region29: #{tpu_custom_call.1} parent=23 // pred_check
          %p246 = pneg %p83
        $region30: #{tpu_custom_call.1} parent=23 // pred_check_branch
          %248 = sbr.rel (%p246) target = $region32
        $region31: #{tpu_custom_call.1} parent=23 // pred_region
          %s249 = smul.u32 2, %s28
          %s251 = ssub.s32 1024, 1024
          %252 = vsyncadd %s242, %s251
          %s253 = smul.addr %s27, 8
          %s254 = sadd.s32 %s249, %s253
          %s255 = smul.addr %s254, 128
          %s256 = scalar_lea.hbm %s2, %s255
          %s257 = sshll.u32 %s245, 4
          %s258 = int_to_ptr.vmem [resolvable:$true] %s257
          %263 = dma.vmem_to_hbm [thread:$0]  %s258, 1024, %s256, %s242, 128, 128, 8
        $region32: #{tpu_custom_call.1} parent=23 // pred_fallthru
          _
      $region24: #{tpu_custom_call.1} parent=5 // pred_fallthru
        _
      %p264 = scmp.le.s32.totalorder 2, %s18
      // Predicated region
      $region33: #{tpu_custom_call.1} parent=5 // pred_check
        %p265 = pneg %p264
      $region34: #{tpu_custom_call.1} parent=5 // pred_check_branch
        %267 = sbr.rel (%p265) target = $region36
      $region35: #{tpu_custom_call.1} parent=5 // pred_region
        %s268 = ssub.s32 %s18, 2
        // Predicated region
        $region37: #{tpu_custom_call.1} parent=35 // pred_check
          %p269 = pneg %p89
        $region38: #{tpu_custom_call.1} parent=35 // pred_check_branch
          %271 = sbr.rel (%p269) target = $region40
        $region39: #{tpu_custom_call.1} parent=35 // pred_region
          %s272 = sand.u32 %s74, 1
          %s273 = scalar_lea.sflag [#allocation6], %s272
          %s274 = sand.u32 %s74, 1
          %s275 = smul.addr %s274, 64
          %s276 = scalar_lea.vmem [#allocation7], %s275
          %277 = dma.done %s273, 1024
        $region40: #{tpu_custom_call.1} parent=35 // pred_fallthru
          _
      $region36: #{tpu_custom_call.1} parent=5 // pred_fallthru
        _
    $region6: #{tpu_custom_call.1} parent=1 // loop_footer
      %s22 = sadd.s32 1, %s18
    $region7: #{tpu_custom_call.1} parent=1 // loop_footer_branch
      %17 = sbr.rel target = $region3
    $region8: #{tpu_custom_call.1} parent=1 // loop_exit
      _
    %278 = vsyncpa [#allocation5], 1
    %s279 = scalar_lea.sflag [#allocation5], 1
    %280 = vsyncpa %s279, 1
    %281 = vsyncpa [#allocation6], 1
    %s282 = scalar_lea.sflag [#allocation6], 1
    %283 = vsyncpa %s282, 1

</llo_original>
